<compile_context>
chip_gen: v7x
topology: tpu7x:2x2x1
jax: 0.10.0
libtpu: 0.0.40
codegen_flags: <defaults>
</compile_context>

<pallas_src>
import jax
import jax.numpy as jnp
from jax.experimental import pallas as pl
from jax.experimental.pallas import tpu as pltpu


def _round_up(a, b):
    return -(-a // b) * b


def _patch_embed_kernel(p_ref, w_ref, b_ref, out_ref):
    # p_ref: (tile_rows, rp*Kd)  w_ref: (rp*Kd, rp*E)
    # b_ref: (1, rp*E) f32       out_ref: (tile_rows, rp*E)
    acc = jnp.dot(p_ref[...], w_ref[...], preferred_element_type=jnp.float32)
    out_ref[...] = (acc + b_ref[...].astype(jnp.float32)).astype(out_ref.dtype)


def patch_embed_forward(x, w_dw, b_dw, w_pw, b_pw, *, kernel_size, stride,
                        tile_n=None, compute_dtype=None):
    """Forward pass of PatchEmbed.

    x: (B, C, H, W); w_dw: (C, 1, K, K); b_dw: (C,); w_pw: (C, E); b_pw: (E,)
    Returns ((B, out_h*out_w, E), (out_h, out_w)) — matches PatchEmbed.forward.
    """
    assert kernel_size == stride, "patch embedding uses kernel_size == stride"
    B, C, H, W = x.shape
    K = kernel_size
    E = w_pw.shape[1]

    if compute_dtype is None:
        compute_dtype = x.dtype
    itemsize = jnp.dtype(compute_dtype).itemsize
    sublane = 8 * (4 // itemsize)          # f32: 8, bf16: 16, int8/fp8: 32

    # AdaptivePadding 'corner': zero-pad bottom/right so the filter covers all.
    out_h = -(-H // K)
    out_w = -(-W // K)
    pad_h = out_h * K - H
    pad_w = out_w * K - W

    # Downcast BEFORE the extraction pass so the transpose copy writes the
    # narrow dtype (halves pre-pass HBM bytes when activations are bf16).
    xc = x.astype(compute_dtype)
    if pad_h or pad_w:
        xc = jnp.pad(xc, ((0, 0), (0, 0), (0, pad_h), (0, pad_w)))

    # Patch extraction (XLA glue): (B, C, Hp, Wp) -> (N, C*K*K).
    # TODO(synk): folding extraction into the kernel's own DMA (BlockSpec over
    # NCHW) risks an in-kernel relayout crossing (8,128) tiles; kept in XLA.
    xp = xc.reshape(B, C, out_h, K, out_w, K)
    xp = jnp.transpose(xp, (0, 2, 4, 1, 3, 5))          # (B, oh, ow, C, K, K)
    patches = xp.reshape(B * out_h * out_w, C * K * K)
    N, CKK = patches.shape

    # Fuse depthwise + pointwise into one matmul; product in f32, cast once.
    w_fused = (w_dw.reshape(C, K * K).astype(jnp.float32)[:, :, None]
               * w_pw.astype(jnp.float32)[:, None, :]).reshape(CKK, E)
    b_fused = (b_dw.astype(jnp.float32) @ w_pw.astype(jnp.float32)
               + b_pw.astype(jnp.float32)).reshape(1, E)

    # Pad the contraction dim only to the dtype sublane multiple (NOT 128):
    # all blocks span the full second dim, so the BlockSpec rule holds and
    # Mosaic masks the partial contraction vreg for free.
    Kd = _round_up(CKK, sublane)

    # Lane-dense output: pack rp consecutive patch rows per kernel row so the
    # output last dim is rp*E == 128 (block-diagonal weight replication).
    rp = 128 // E if (E < 128 and 128 % E == 0) else 1
    # TODO(synk): E not dividing 128 (e.g. 96/160) -> rp=1, masked partial
    # stores (correct, perf-only).

    align = sublane * rp                   # rows/step: sublane packing * rp

    # Tile selection: >= ~2 MiB of patch data per grid step (per-step overhead
    # ~0.35 us), capped by (a) a VMEM budget that fits v7x's 64 MiB part with
    # double-buffering intact, (b) the padded row count, and (c) >= 2 grid
    # steps when possible so both v7x TensorCores get work.
    row_bytes = Kd * itemsize
    if tile_n is None:
        tile = _round_up(max(512, -(-(2 << 20) // row_bytes)), align)
    else:
        tile = _round_up(max(tile_n, align), align)
    io_budget = 24 << 20                   # double-buffered patches + out
    tile_vmem_cap = max(align,
                        (io_budget // (2 * (Kd + E) * itemsize)) // align * align)
    tile = min(tile, tile_vmem_cap)
    tile = min(tile, _round_up(N, align))
    if N > align:
        tile = min(tile, _round_up(-(-N // 2), align))
    tile = max(tile, align)

    Np = _round_up(N, tile)
    grid = Np // tile
    tile_rows = tile // rp

    # Single pad materialization: row pad and contraction pad together.
    if Np != N or Kd != CKK:
        patches = jnp.pad(patches, ((0, Np - N), (0, Kd - CKK)))
    patches = patches.reshape(Np // rp, rp * Kd)

    if Kd != CKK:
        w_fused = jnp.pad(w_fused, ((0, Kd - CKK), (0, 0)))
    if rp > 1:
        w_fused = jnp.kron(jnp.eye(rp, dtype=w_fused.dtype), w_fused)  # (rp*Kd, rp*E)
        b_fused = jnp.tile(b_fused, (1, rp))                           # (1, rp*E)
    w_fused = w_fused.astype(compute_dtype)     # cast once after f32 fusion
    b_fused = b_fused.astype(jnp.float32)

    # Explicit VMEM limit from the actual buffers: double-buffered in/out
    # tiles + (double-buffered) weight + bias + margin.
    # TODO(synk): pipeline_mode=pl.Buffered(1) on the constant weight/bias
    # specs would halve their VMEM; kept on default buffering for portability.
    vmem_need = (2 * tile * (Kd + E) * itemsize
                 + 2 * (rp * Kd) * (rp * E) * itemsize
                 + 2 * (rp * E) * 4)
    vmem_limit = int(min(max(vmem_need * 13 // 10 + (2 << 20), 16 << 20),
                         60 << 20))

    out = pl.pallas_call(
        _patch_embed_kernel,
        out_shape=jax.ShapeDtypeStruct((Np // rp, rp * E), compute_dtype),
        grid=(grid,),
        in_specs=[
            pl.BlockSpec((tile_rows, rp * Kd), lambda i: (i, 0)),
            pl.BlockSpec((rp * Kd, rp * E), lambda i: (0, 0)),
            pl.BlockSpec((1, rp * E), lambda i: (0, 0)),
        ],
        out_specs=pl.BlockSpec((tile_rows, rp * E), lambda i: (i, 0)),
        compiler_params=pltpu.CompilerParams(
            dimension_semantics=("parallel",),
            vmem_limit_bytes=vmem_limit),
    )(patches, w_fused, b_fused)

    # (Np//rp, rp*E) is a pure row-major view of (Np, E).
    out = out.reshape(Np, E)[:N].reshape(B, out_h * out_w, E)
    # TODO(synk): optional norm layer (norm_cfg) not implemented (default None).
    return out, (out_h, out_w)


def _reference(x, w_dw, b_dw, w_pw, b_pw, K):
    """Pure-JAX reference: corner pad + depthwise conv + 1x1 conv + flatten."""
    B, C, H, W = x.shape
    E = w_pw.shape[1]
    out_h = -(-H // K)
    out_w = -(-W // K)
    x = jnp.pad(x, ((0, 0), (0, 0), (0, out_h * K - H), (0, out_w * K - W)))
    dw = jax.lax.conv_general_dilated(
        x, w_dw, window_strides=(K, K), padding="VALID",
        feature_group_count=C,
        dimension_numbers=("NCHW", "OIHW", "NCHW"))
    dw = dw + b_dw.reshape(1, C, 1, 1)
    wp = jnp.transpose(w_pw, (1, 0)).reshape(E, C, 1, 1)
    pw = jax.lax.conv_general_dilated(
        dw, wp, window_strides=(1, 1), padding="VALID",
        dimension_numbers=("NCHW", "OIHW", "NCHW"))
    pw = pw + b_pw.reshape(1, E, 1, 1)
    y = pw.reshape(B, E, out_h * out_w)
    return jnp.transpose(y, (0, 2, 1)), (out_h, out_w)


if __name__ == "__main__":
    key = jax.random.PRNGKey(0)
    kx, k1, k2, k3, k4 = jax.random.split(key, 5)

    def run_case(B, C, H, W, K, E, tile_n=None):
        x = jax.random.normal(kx, (B, C, H, W), dtype=jnp.float32)
        w_dw = jax.random.normal(k1, (C, 1, K, K), dtype=jnp.float32) * 0.1
        b_dw = jax.random.normal(k2, (C,), dtype=jnp.float32) * 0.1
        w_pw = jax.random.normal(k3, (C, E), dtype=jnp.float32) * 0.1
        b_pw = jax.random.normal(k4, (E,), dtype=jnp.float32) * 0.1

        out, out_size = patch_embed_forward(
            x, w_dw, b_dw, w_pw, b_pw, kernel_size=K, stride=K, tile_n=tile_n)
        out = jax.block_until_ready(out)

        ref, ref_size = _reference(x, w_dw, b_dw, w_pw, b_pw, K)
        assert out.shape == (B, out_size[0] * out_size[1], E), out.shape
        assert out_size == ref_size
        err = float(jnp.max(jnp.abs(out - ref)))
        assert jnp.allclose(out, ref, atol=1e-4, rtol=1e-4), err

    # Small case exercising 'corner' adaptive padding (H=W=15, K=4): grid of 1.
    run_case(B=2, C=4, H=15, W=15, K=4, E=32)
    # Larger spatial case: N=512 patch rows, auto tile -> 2 parallel grid steps.
    run_case(B=2, C=4, H=64, W=64, K=4, E=32)
    # Non-128 contraction (C*K*K=75 -> padded only to 80): exercises the
    # sublane-only padding path (rp*Kd = 320, not a multiple of 128).
    run_case(B=2, C=3, H=15, W=15, K=5, E=32)

    print("KERNEL_OK")
</pallas_src>

<mosaic_0001>
module attributes {stable_mosaic.version = 11 : i64} {
  func.func @_patch_embed_kernel(%arg0: i32, %arg1: memref<8x256xf32, #tpu.memory_space<vmem>>, %arg2: memref<256x128xf32, #tpu.memory_space<vmem>>, %arg3: memref<1x128xf32, #tpu.memory_space<vmem>>, %arg4: memref<8x128xf32, #tpu.memory_space<vmem>>) attributes {dimension_semantics = [#tpu.dimension_semantics<parallel>], iteration_bounds = array<i64: 1>, scalar_prefetch = 0 : i64, scratch_operands = 0 : i64, tpu.core_type = #tpu.core_type<tc>, window_params = [{transform_indices = @transform_0, window_bounds = array<i64: 8, 256>}, {pipeline_mode = #tpu.pipeline_mode<synchronous>, transform_indices = @transform_1, window_bounds = array<i64: 256, 128>}, {pipeline_mode = #tpu.pipeline_mode<synchronous>, transform_indices = @transform_2, window_bounds = array<i64: 1, 128>}, {transform_indices = @transform_3, window_bounds = array<i64: 8, 128>}]} {
    %c0 = arith.constant 0 : index
    %c0_0 = arith.constant 0 : index
    %0 = vector.load %arg1[%c0, %c0_0] : memref<8x256xf32, #tpu.memory_space<vmem>>, vector<8x256xf32>
    %c0_1 = arith.constant 0 : index
    %c0_2 = arith.constant 0 : index
    %1 = vector.load %arg2[%c0_1, %c0_2] : memref<256x128xf32, #tpu.memory_space<vmem>>, vector<256x128xf32>
    %cst = arith.constant dense<0.000000e+00> : vector<8x128xf32>
    %2 = tpu.matmul %0, %1, %cst {dimension_numbers = #tpu.dot_dimension_numbers<[1], [0], [0], [1], [0, 0, 1, 1], [], []>} : vector<8x256xf32>, vector<256x128xf32>, vector<8x128xf32> -> vector<8x128xf32>
    %c0_3 = arith.constant 0 : index
    %c0_4 = arith.constant 0 : index
    %3 = vector.load %arg3[%c0_3, %c0_4] : memref<1x128xf32, #tpu.memory_space<vmem>>, vector<1x128xf32>
    %4 = vector.broadcast %3 : vector<1x128xf32> to vector<8x128xf32>
    %5 = arith.addf %2, %4 : vector<8x128xf32>
    %c0_5 = arith.constant 0 : index
    %c0_6 = arith.constant 0 : index
    %6 = vector.load %arg4[%c0_5, %c0_6] : memref<8x128xf32, #tpu.memory_space<vmem>>, vector<8x128xf32>
    tpu.vector_store %arg4[%c0_5, %c0_6], %5 {strides = array<i32>} : memref<8x128xf32, #tpu.memory_space<vmem>>, vector<8x128xf32>,
    return
  }
  func.func @transform_0(%arg0: i32) -> (i32, i32) {
    %c0_i32 = arith.constant 0 : i32
    %c0_i32_0 = arith.constant 0 : i32
    return %arg0, %c0_i32 : i32, i32
  }
  func.func @transform_1(%arg0: i32) -> (i32, i32) {
    %c0_i32 = arith.constant 0 : i32
    %c0_i32_0 = arith.constant 0 : i32
    %c0_i32_1 = arith.constant 0 : i32
    return %c0_i32, %c0_i32_0 : i32, i32
  }
  func.func @transform_2(%arg0: i32) -> (i32, i32) {
    %c0_i32 = arith.constant 0 : i32
    %c0_i32_0 = arith.constant 0 : i32
    %c0_i32_1 = arith.constant 0 : i32
    return %c0_i32, %c0_i32_0 : i32, i32
  }
  func.func @transform_3(%arg0: i32) -> (i32, i32) {
    %c0_i32 = arith.constant 0 : i32
    %c0_i32_0 = arith.constant 0 : i32
    return %arg0, %c0_i32 : i32, i32
  }
}

</mosaic_0001>

<llo_original>
// kernel: tpu_custom_call.1
$region0: #{tpu_custom_call.1}
  #allocation0 [shape = 'u32[]', space=smem, size = 0x4, offset = 0x4, fixed_abs, tag = 'smem constant byte address 0x4 - core index']
  #allocation1 [shape = 'u32[144,128]{1,0:T(1,128)}', space=vmem, size = 0x12000, scoped, tag = 'internal scratch']
  %s0 = inlined_call_operand.hbm [shape: f32[8,256], index: 0, kind: input, shape index: {}]
  %s1 = inlined_call_operand.hbm [shape: f32[256,128], index: 1, kind: input, shape index: {}]
  %s2 = inlined_call_operand.vmem [shape: f32[1,128], index: 2, kind: input, shape index: {}]
  %s3 = inlined_call_operand.hbm [shape: f32[8,128], index: 3, kind: output, shape index: {}]
  %s4 = sld [smem:[#allocation0]]
  $region30: #{tpu_custom_call.1} parent=0
    _
  %s6 = ssub.s32 1, %s4
  %s7 = scalar_select 0, %s6, %s4
  $region1: #{tpu_custom_call.1} parent=0
    #allocation2 [shape = 'u8[8192]{0}', space=vmem, size = 0x2000, scoped, tag = 'input window, operand 0, single buffered']
    #allocation3 [shape = 's32[1]{0}', space=sflag, size = 0x4, scoped, tag = 'scoped memory for tpu_custom_call.1']
    #allocation4 [shape = 's32[1]{0}', space=sflag, size = 0x4, scoped, tag = 'scoped memory for tpu_custom_call.1']
    #allocation5 [shape = 'u8[131072]{0}', space=vmem, size = 0x20000, scoped, tag = 'input window, operand 1, single buffered']
    #allocation6 [shape = 's32[1]{0}', space=sflag, size = 0x4, scoped, tag = 'scoped memory for tpu_custom_call.1']
    #allocation7 [shape = 'u8[4096]{0}', space=vmem, size = 0x1000, scoped, tag = 'output window, operand 0, single buffered']
    %8 = vsyncpa [#allocation3], 0
    %9 = vsyncpa [#allocation6], 0
    %10 = vsyncpa [#allocation4], 0
    // Predicated region
    $region2: #{tpu_custom_call.1} parent=1 // pred_check
      _
    $region3: #{tpu_custom_call.1} parent=1 // pred_check_branch
      %12 = sbr.rel (0) target = $region5
    $region4: #{tpu_custom_call.1} parent=1 // pred_region
      %s14 = ssub.s32 256, 256
      %15 = vsyncadd [#allocation3], %s14
      %s17 = sshll.u32 [#allocation2], 4
      %s18 = int_to_ptr.vmem [resolvable:$true] %s17
      %20 = dma.hbm_to_vmem [thread:$0]  %s0, 256, %s18, [#allocation3]
    $region5: #{tpu_custom_call.1} parent=1 // pred_fallthru
      _
    // Predicated region
    $region6: #{tpu_custom_call.1} parent=1 // pred_check
      _
    $region7: #{tpu_custom_call.1} parent=1 // pred_check_branch
      %22 = sbr.rel (0) target = $region9
    $region8: #{tpu_custom_call.1} parent=1 // pred_region
      %s24 = ssub.s32 4096, 4096
      %25 = vsyncadd [#allocation6], %s24
      %s26 = sshll.u32 [#allocation5], 4
      %s27 = int_to_ptr.vmem [resolvable:$true] %s26
      %32 = dma.hbm_to_vmem [thread:$0]  %s1, 4096, %s27, [#allocation6], 128, 128, 8
    $region9: #{tpu_custom_call.1} parent=1 // pred_fallthru
      _
    // Predicated region
    $region10: #{tpu_custom_call.1} parent=1 // pred_check
      _
    $region11: #{tpu_custom_call.1} parent=1 // pred_check_branch
      %34 = sbr.rel (0) target = $region13
    $region12: #{tpu_custom_call.1} parent=1 // pred_region
      _
    $region13: #{tpu_custom_call.1} parent=1 // pred_fallthru
      _
    // Predicated region
    $region14: #{tpu_custom_call.1} parent=1 // pred_check
      _
    $region15: #{tpu_custom_call.1} parent=1 // pred_check_branch
      %36 = sbr.rel (0) target = $region17
    $region16: #{tpu_custom_call.1} parent=1 // pred_region
      %37 = dma.done [#allocation3], 256
    $region17: #{tpu_custom_call.1} parent=1 // pred_fallthru
      _
    // Predicated region
    $region18: #{tpu_custom_call.1} parent=1 // pred_check
      _
    $region19: #{tpu_custom_call.1} parent=1 // pred_check_branch
      %39 = sbr.rel (0) target = $region21
    $region20: #{tpu_custom_call.1} parent=1 // pred_region
      %40 = dma.done [#allocation6], 4096
    $region21: #{tpu_custom_call.1} parent=1 // pred_fallthru
      _
    %v41 = vld [vmem:[#allocation2] sm:$0xff]
    %v42 = vld [vmem:[#allocation2 + $0x8] sm:$0xff]
    %v43 = vld [vmem:[#allocation5] sm:$0xff]
    %v44 = vld [vmem:[#allocation5 + $0x8] sm:$0xff]
    %v45 = vld [vmem:[#allocation5 + $0x10] sm:$0xff]
    %v46 = vld [vmem:[#allocation5 + $0x18] sm:$0xff]
    %v47 = vld [vmem:[#allocation5 + $0x20] sm:$0xff]
    %v48 = vld [vmem:[#allocation5 + $0x28] sm:$0xff]
    %v49 = vld [vmem:[#allocation5 + $0x30] sm:$0xff]
    %v50 = vld [vmem:[#allocation5 + $0x38] sm:$0xff]
    %v51 = vld [vmem:[#allocation5 + $0x40] sm:$0xff]
    %v52 = vld [vmem:[#allocation5 + $0x48] sm:$0xff]
    %v53 = vld [vmem:[#allocation5 + $0x50] sm:$0xff]
    %v54 = vld [vmem:[#allocation5 + $0x58] sm:$0xff]
    %v55 = vld [vmem:[#allocation5 + $0x60] sm:$0xff]
    %v56 = vld [vmem:[#allocation5 + $0x68] sm:$0xff]
    %v57 = vld [vmem:[#allocation5 + $0x70] sm:$0xff]
    %v58 = vld [vmem:[#allocation5 + $0x78] sm:$0xff]
    %v59 = vld [vmem:[#allocation5 + $0x80] sm:$0xff]
    %v60 = vld [vmem:[#allocation5 + $0x88] sm:$0xff]
    %v61 = vld [vmem:[#allocation5 + $0x90] sm:$0xff]
    %v62 = vld [vmem:[#allocation5 + $0x98] sm:$0xff]
    %v63 = vld [vmem:[#allocation5 + $0xa0] sm:$0xff]
    %v64 = vld [vmem:[#allocation5 + $0xa8] sm:$0xff]
    %v65 = vld [vmem:[#allocation5 + $0xb0] sm:$0xff]
    %v66 = vld [vmem:[#allocation5 + $0xb8] sm:$0xff]
    %v67 = vld [vmem:[#allocation5 + $0xc0] sm:$0xff]
    %v68 = vld [vmem:[#allocation5 + $0xc8] sm:$0xff]
    %v69 = vld [vmem:[#allocation5 + $0xd0] sm:$0xff]
    %v70 = vld [vmem:[#allocation5 + $0xd8] sm:$0xff]
    %v71 = vld [vmem:[#allocation5 + $0xe0] sm:$0xff]
    %v72 = vld [vmem:[#allocation5 + $0xe8] sm:$0xff]
    %v73 = vld [vmem:[#allocation5 + $0xf0] sm:$0xff]
    %v74 = vld [vmem:[#allocation5 + $0xf8] sm:$0xff]
    %v75 = vld [vmem:[%s2] sm:$0x1]
    %v77 = vlaneseq
    %v78 = vshrl.u32 %v77, 7
    %v79 = vsub.s32 0, %v78
    %v80 = vrot.slane %v75, %v79
    %82 = vmatprep.subr.mxu0 0.0
    %83 = vmatpush1.msra.mxu0 %v43
    %84 = vmatprep.subr.mxu0 0.0
    %85 = vmatpush1.msra.mxu0 %v44
    %86 = vmatprep.subr.mxu0 0.0
    %87 = vmatpush1.msra.mxu0 %v45
    %88 = vmatprep.subr.mxu0 0.0
    %89 = vmatpush1.msra.mxu0 %v46
    %90 = vmatprep.subr.mxu0 0.0
    %91 = vmatpush1.msra.mxu0 %v47
    %92 = vmatprep.subr.mxu0 0.0
    %93 = vmatpush1.msra.mxu0 %v48
    %94 = vmatprep.subr.mxu0 0.0
    %95 = vmatpush1.msra.mxu0 %v49
    %96 = vmatprep.subr.mxu0 0.0
    %97 = vmatpush1.msra.mxu0 %v50
    %98 = vmatprep.subr.mxu0 0.0
    %99 = vmatpush1.msra.mxu0 %v51
    %100 = vmatprep.subr.mxu0 0.0
    %101 = vmatpush1.msra.mxu0 %v52
    %102 = vmatprep.subr.mxu0 0.0
    %103 = vmatpush1.msra.mxu0 %v53
    %104 = vmatprep.subr.mxu0 0.0
    %105 = vmatpush1.msra.mxu0 %v54
    %106 = vmatprep.subr.mxu0 0.0
    %107 = vmatpush1.msra.mxu0 %v55
    %108 = vmatprep.subr.mxu0 0.0
    %109 = vmatpush1.msra.mxu0 %v56
    %110 = vmatprep.subr.mxu0 0.0
    %111 = vmatpush1.msra.mxu0 %v57
    %112 = vmatprep.subr.mxu0 0.0
    %113 = vmatpush1.msra.mxu0 %v58
    %114 = vmatprep.subr.mxu0 0.0
    %115 = vmatpush1.msra.mxu0 %v59
    %116 = vmatprep.subr.mxu0 0.0
    %117 = vmatpush1.msra.mxu0 %v60
    %118 = vmatprep.subr.mxu0 0.0
    %119 = vmatpush1.msra.mxu0 %v61
    %120 = vmatprep.subr.mxu0 0.0
    %121 = vmatpush1.msra.mxu0 %v62
    %122 = vmatprep.subr.mxu0 0.0
    %123 = vmatpush1.msra.mxu0 %v63
    %124 = vmatprep.subr.mxu0 0.0
    %125 = vmatpush1.msra.mxu0 %v64
    %126 = vmatprep.subr.mxu0 0.0
    %127 = vmatpush1.msra.mxu0 %v65
    %128 = vmatprep.subr.mxu0 0.0
    %129 = vmatpush1.msra.mxu0 %v66
    %130 = vmatprep.subr.mxu0 0.0
    %131 = vmatpush1.msra.mxu0 %v67
    %132 = vmatprep.subr.mxu0 0.0
    %133 = vmatpush1.msra.mxu0 %v68
    %134 = vmatprep.subr.mxu0 0.0
    %135 = vmatpush1.msra.mxu0 %v69
    %136 = vmatprep.subr.mxu0 0.0
    %137 = vmatpush1.msra.mxu0 %v70
    %138 = vmatprep.subr.mxu0 0.0
    %139 = vmatpush1.msra.mxu0 %v71
    %140 = vmatprep.subr.mxu0 0.0
    %141 = vmatpush1.msra.mxu0 %v72
    %142 = vmatprep.subr.mxu0 0.0
    %143 = vmatpush1.msra.mxu0 %v73
    %144 = vmatprep.subr.mxu0 0.0
    %145 = vmatpush1.msra.mxu0 %v74
    %146 = vmatprep.mubr.f32.mxu0 %v42
    %147 = vmatmul.mubr.f32.gmra.mrb[0].mxu0 %v41
    %v148 = vpop.f32.mrb[0].mxu0
    %v149 = vadd.f32 %v80, %v148
    %v150 = vpop.f32.mrb[0].mxu0
    %151 = vdwg.mxu0
    %152 = vst [vmem:[#allocation7] sm:$0xff] %v149
    // Predicated region
    $region22: #{tpu_custom_call.1} parent=1 // pred_check
      _
    $region23: #{tpu_custom_call.1} parent=1 // pred_check_branch
      %154 = sbr.rel (0) target = $region25
    $region24: #{tpu_custom_call.1} parent=1 // pred_region
      %s156 = ssub.s32 128, 128
      %157 = vsyncadd [#allocation4], %s156
      %s159 = sshll.u32 [#allocation7], 4
      %s160 = int_to_ptr.vmem [resolvable:$true] %s159
      %162 = dma.vmem_to_hbm [thread:$0]  %s160, 128, %s3, [#allocation4]
    $region25: #{tpu_custom_call.1} parent=1 // pred_fallthru
      _
    // Predicated region
    $region26: #{tpu_custom_call.1} parent=1 // pred_check
      _
    $region27: #{tpu_custom_call.1} parent=1 // pred_check_branch
      %164 = sbr.rel (0) target = $region29
    $region28: #{tpu_custom_call.1} parent=1 // pred_region
      %165 = dma.done [#allocation4], 128
    $region29: #{tpu_custom_call.1} parent=1 // pred_fallthru
      _
    %166 = vsyncpa [#allocation3], 1
    %167 = vsyncpa [#allocation6], 1
    %168 = vsyncpa [#allocation4], 1

</llo_original>
